<compile_context>
chip_gen: v6e
topology: v6e:2x2x1
jax: 0.10.0
libtpu: 0.0.40
codegen_flags: <defaults>
</compile_context>

<pallas_src>
import functools

import jax
import jax.numpy as jnp
from jax import lax
from jax.experimental import pallas as pl
from jax.experimental.pallas import tpu as pltpu

# Model / problem configuration (small, deterministic).
HIDDEN = 32            # args.hidden_size
NUM_EXPERTS = 8        # args.moe_num_experts
TOP_K = 2              # args.moe_top_k

LANE = 128             # TPU lane width
MAX_TILE_T = 8192      # lane-padded x double buffer = 2 * tile_t * 512 B = 8 MiB
VMEM_LIMIT_BYTES = 32 * 1024 * 1024


def _round_up(n, m):
    return ((n + m - 1) // m) * m


def _router_kernel(x_ref, wt_ref, b_ref, *out_refs, with_scores: bool):
    if with_scores:
        scores_ref, ew_ref, ei_ref = out_refs
    else:
        scores_ref = None
        ew_ref, ei_ref = out_refs

    x = x_ref[...].astype(jnp.float32)           # (tile_t, H)
    wt = wt_ref[...].astype(jnp.float32)         # (H, E)  (pre-transposed weight)
    b = b_ref[...].astype(jnp.float32)           # (E, 1)

    # MXU matmul in the natural (M, K) @ (K, N) form, then transpose only the
    # narrow (tile_t, E=8) result into the lane-dense (E, tile_t) layout that
    # the softmax / top-k sublane reductions and dense stores want.
    logits_te = jnp.dot(x, wt, preferred_element_type=jnp.float32)   # (tile_t, E)
    logits = jnp.transpose(logits_te) + b                            # (E, tile_t)

    # Numerically stable softmax stats over experts (sublane axis -> XLU,
    # exp -> EUP).  Normalization of the full (E, tile_t) array only happens
    # when scores are actually written back.
    m = jnp.max(logits, axis=0, keepdims=True)               # (1, tile_t)
    ex = jnp.exp(logits - m)                                  # (E, tile_t)
    inv = 1.0 / jnp.sum(ex, axis=0, keepdims=True)            # (1, tile_t), exact

    if with_scores:
        scores_ref[...] = (ex * inv).astype(scores_ref.dtype)

    # Iterative top-k on the unnormalized ex (k small & static).  inv > 0 is a
    # per-token scalar, so ordering and exact-equality ties match the
    # normalized probs; ties resolve to the lowest expert index, matching
    # torch.topk / lax.top_k.  Results go straight into rows of the lane-dense
    # (TOP_K, tile_t) outputs; only the selected maxima are normalized.
    num_e = ex.shape[0]
    row_idx = lax.broadcasted_iota(jnp.int32, ex.shape, 0)    # (E, tile_t)
    work = ex
    for kk in range(TOP_K):
        mx = jnp.max(work, axis=0, keepdims=True)             # (1, tile_t)
        sel = jnp.min(jnp.where(work == mx, row_idx, num_e),
                      axis=0, keepdims=True)                  # (1, tile_t) i32
        ew_ref[pl.ds(kk, 1), :] = (mx * inv).astype(ew_ref.dtype)
        ei_ref[pl.ds(kk, 1), :] = sel
        if kk + 1 < TOP_K:
            work = jnp.where(row_idx == sel, -jnp.inf, work)


def loss_free_router_forward(x, weight, expert_biases, *,
                             return_scores=True, lane_major_outputs=False):
    """x: (..., H); weight: (E, H); expert_biases: (E,).

    Default returns (scores, expert_weights, expert_indices) with shapes
    (*batch, E), (*batch, k), (*batch, k) — torch layout.  Indices are int32
    (torch uses int64).  With return_scores=False the scores writeback is
    skipped.  With lane_major_outputs=True the lane-dense kernel layout
    ((E, T) / (k, T)) is returned as-is for fused MoE-dispatch consumers,
    avoiding the wrapper transpose passes.
    """
    batch_shape = x.shape[:-1]
    flat_x = x.reshape(-1, x.shape[-1])
    T, H = flat_x.shape
    E = weight.shape[0]

    # Token tile: big enough to amortize the fixed per-grid-step cost, small
    # enough for the lane-padded x double buffer to fit every generation's
    # VMEM budget; aim for >= 2 grid steps so both v7x TensorCores get work.
    tile_t = max(LANE, min(MAX_TILE_T, _round_up(pl.cdiv(T, 2), LANE)))
    grid = (pl.cdiv(T, tile_t),)   # ragged last block handled by Pallas (no jnp.pad)

    wt = weight.T                  # (H, E): tiny, so the transpose is free
    b = expert_biases.reshape(E, 1)

    out_shape = []
    out_specs = []
    if return_scores:
        out_shape.append(jax.ShapeDtypeStruct((E, T), x.dtype))
        out_specs.append(pl.BlockSpec((E, tile_t), lambda i: (0, i)))
    out_shape += [
        jax.ShapeDtypeStruct((TOP_K, T), x.dtype),
        jax.ShapeDtypeStruct((TOP_K, T), jnp.int32),
    ]
    out_specs += [
        pl.BlockSpec((TOP_K, tile_t), lambda i: (0, i)),
        pl.BlockSpec((TOP_K, tile_t), lambda i: (0, i)),
    ]

    outs = pl.pallas_call(
        functools.partial(_router_kernel, with_scores=return_scores),
        out_shape=tuple(out_shape),
        grid_spec=pltpu.PrefetchScalarGridSpec(
            num_scalar_prefetch=0,
            grid=grid,
            in_specs=[
                pl.BlockSpec((tile_t, H), lambda i: (i, 0)),  # x tile
                pl.BlockSpec((H, E), lambda i: (0, 0)),       # W^T (VMEM resident)
                pl.BlockSpec((E, 1), lambda i: (0, 0)),       # biases (resident)
            ],
            out_specs=out_specs,
        ),
        compiler_params=pltpu.CompilerParams(
            dimension_semantics=("parallel",),
            vmem_limit_bytes=VMEM_LIMIT_BYTES),
    )(flat_x, wt, b)

    if return_scores:
        scores_t, ew_t, ei_t = outs
    else:
        ew_t, ei_t = outs

    if lane_major_outputs:
        # Hand the lane-dense layout straight to a fused consumer; no XLA
        # transpose passes over the outputs.
        return outs

    # Torch-compatible layout: transpose (k, T) (tiny) and, if requested,
    # (E, T) back to tokens-major.
    ew = ew_t.T.reshape(*batch_shape, TOP_K)
    ei = ei_t.T.reshape(*batch_shape, TOP_K)
    if return_scores:
        scores = scores_t.T.reshape(*batch_shape, E)
        return scores, ew, ei
    return ew, ei


def _reference_forward(x, weight, expert_biases):
    flat_x = x.reshape(-1, x.shape[-1]).astype(jnp.float32)
    logits = flat_x @ weight.T.astype(jnp.float32) + expert_biases.astype(jnp.float32)
    probs = jax.nn.softmax(logits, axis=-1)
    ew, ei = lax.top_k(probs, TOP_K)
    batch_shape = x.shape[:-1]
    return (probs.reshape(*batch_shape, -1).astype(x.dtype),
            ew.reshape(*batch_shape, -1).astype(x.dtype),
            ei.reshape(*batch_shape, -1).astype(jnp.int32))


if __name__ == "__main__":
    key = jax.random.PRNGKey(0)
    kx, kw, kx2 = jax.random.split(key, 3)

    # Small shapes: batch=2, seq=8, hidden=32, experts=8, top_k=2.
    x = jax.random.normal(kx, (2, 8, HIDDEN), dtype=jnp.float32)
    # Deterministic stand-in for args.init_method on the Linear weight (E, H).
    weight = 0.02 * jax.random.normal(kw, (NUM_EXPERTS, HIDDEN), dtype=jnp.float32)
    # register_buffer('expert_biases', zeros(E))
    expert_biases = jnp.zeros((NUM_EXPERTS,), dtype=jnp.float32)

    scores, expert_weights, expert_indices = loss_free_router_forward(
        x, weight, expert_biases)
    jax.block_until_ready((scores, expert_weights, expert_indices))

    # Correctness check against a pure-JAX reference.
    ref_s, ref_w, ref_i = _reference_forward(x, weight, expert_biases)
    assert scores.shape == (2, 8, NUM_EXPERTS)
    assert expert_weights.shape == (2, 8, TOP_K)
    assert expert_indices.shape == (2, 8, TOP_K)
    assert jnp.allclose(scores, ref_s, atol=1e-5, rtol=1e-5)
    assert jnp.allclose(expert_weights, ref_w, atol=1e-5, rtol=1e-5)
    assert jnp.array_equal(expert_indices, ref_i)

    # Exercise the scores-skipping fast path too.
    ew2, ei2 = loss_free_router_forward(x, weight, expert_biases,
                                        return_scores=False)
    jax.block_until_ready((ew2, ei2))
    assert jnp.allclose(ew2, ref_w, atol=1e-5, rtol=1e-5)
    assert jnp.array_equal(ei2, ref_i)

    # Multi-step grid with a ragged last block (T=400 tokens, no jnp.pad).
    x_big = jax.random.normal(kx2, (5, 80, HIDDEN), dtype=jnp.float32)
    s3, ew3, ei3 = loss_free_router_forward(x_big, weight, expert_biases)
    jax.block_until_ready((s3, ew3, ei3))
    ref_s3, ref_w3, ref_i3 = _reference_forward(x_big, weight, expert_biases)
    assert jnp.allclose(s3, ref_s3, atol=1e-5, rtol=1e-5)
    assert jnp.allclose(ew3, ref_w3, atol=1e-5, rtol=1e-5)
    assert jnp.array_equal(ei3, ref_i3)

    # bf16 activations/weights smoke test (kernel upcasts internally).
    s4, ew4, ei4 = loss_free_router_forward(
        x.astype(jnp.bfloat16), weight.astype(jnp.bfloat16), expert_biases)
    jax.block_until_ready((s4, ew4, ei4))
    assert s4.dtype == jnp.bfloat16 and ew4.dtype == jnp.bfloat16
    assert s4.shape == (2, 8, NUM_EXPERTS) and ei4.shape == (2, 8, TOP_K)

    print("KERNEL_OK")
</pallas_src>

<mosaic_0001>
module attributes {stable_mosaic.version = 11 : i64} {
  func.func @_router_kernel(%arg0: i32, %arg1: memref<128x32xf32, #tpu.memory_space<vmem>>, %arg2: memref<32x8xf32, #tpu.memory_space<vmem>>, %arg3: memref<8x1xf32, #tpu.memory_space<vmem>>, %arg4: memref<8x128xf32, #tpu.memory_space<vmem>>, %arg5: memref<2x128xf32, #tpu.memory_space<vmem>>, %arg6: memref<2x128xi32, #tpu.memory_space<vmem>>) attributes {dimension_semantics = [#tpu.dimension_semantics<parallel>], iteration_bounds = array<i64: 1>, scalar_prefetch = 0 : i64, scratch_operands = 0 : i64, tpu.core_type = #tpu.core_type<tc>, window_params = [{transform_indices = @transform_0, window_bounds = array<i64: 128, 32>}, {pipeline_mode = #tpu.pipeline_mode<synchronous>, transform_indices = @transform_1, window_bounds = array<i64: 32, 8>}, {pipeline_mode = #tpu.pipeline_mode<synchronous>, transform_indices = @transform_2, window_bounds = array<i64: 8, 1>}, {transform_indices = @transform_3, window_bounds = array<i64: 8, 128>}, {transform_indices = @transform_4, window_bounds = array<i64: 2, 128>}, {transform_indices = @transform_5, window_bounds = array<i64: 2, 128>}]} {
    %c0 = arith.constant 0 : index
    %c0_0 = arith.constant 0 : index
    %0 = vector.load %arg1[%c0, %c0_0] : memref<128x32xf32, #tpu.memory_space<vmem>>, vector<128x32xf32>
    %c0_1 = arith.constant 0 : index
    %c0_2 = arith.constant 0 : index
    %1 = vector.load %arg2[%c0_1, %c0_2] : memref<32x8xf32, #tpu.memory_space<vmem>>, vector<32x8xf32>
    %c0_3 = arith.constant 0 : index
    %c0_4 = arith.constant 0 : index
    %2 = vector.load %arg3[%c0_3, %c0_4] : memref<8x1xf32, #tpu.memory_space<vmem>>, vector<8x1xf32>
    %cst = arith.constant dense<0.000000e+00> : vector<128x8xf32>
    %3 = tpu.matmul %0, %1, %cst {dimension_numbers = #tpu.dot_dimension_numbers<[1], [0], [0], [1], [0, 0, 1, 1], [], []>} : vector<128x32xf32>, vector<32x8xf32>, vector<128x8xf32> -> vector<128x8xf32>
    %4 = tpu.transpose %3, [1, 0] : vector<128x8xf32> -> vector<8x128xf32>
    %5 = vector.broadcast %2 : vector<8x1xf32> to vector<8x128xf32>
    %6 = arith.addf %4, %5 : vector<8x128xf32>
    %cst_5 = arith.constant dense<0xFF800000> : vector<128xf32>
    %7 = vector.multi_reduction <maximumf>, %6, %cst_5 [0] : vector<8x128xf32> to vector<128xf32>
    %8 = vector.shape_cast %7 : vector<128xf32> to vector<1x128xf32>
    %9 = vector.broadcast %8 : vector<1x128xf32> to vector<8x128xf32>
    %10 = arith.subf %6, %9 : vector<8x128xf32>
    %11 = math.exp %10 : vector<8x128xf32>
    %cst_6 = arith.constant dense<0.000000e+00> : vector<128xf32>
    %12 = vector.multi_reduction <add>, %11, %cst_6 [0] : vector<8x128xf32> to vector<128xf32>
    %13 = vector.shape_cast %12 : vector<128xf32> to vector<1x128xf32>
    %cst_7 = arith.constant 1.000000e+00 : f32
    %14 = vector.broadcast %cst_7 : f32 to vector<1x128xf32>
    %15 = arith.divf %14, %13 : vector<1x128xf32>
    %16 = vector.broadcast %15 : vector<1x128xf32> to vector<8x128xf32>
    %17 = arith.mulf %11, %16 : vector<8x128xf32>
    %c0_8 = arith.constant 0 : index
    %c0_9 = arith.constant 0 : index
    %18 = vector.load %arg4[%c0_8, %c0_9] : memref<8x128xf32, #tpu.memory_space<vmem>>, vector<8x128xf32>
    tpu.vector_store %arg4[%c0_8, %c0_9], %17 {strides = array<i32>} : memref<8x128xf32, #tpu.memory_space<vmem>>, vector<8x128xf32>,
    %19 = tpu.iota {dimensions = array<i32: 0>} : vector<8x128xi32>
    %cst_10 = arith.constant dense<0xFF800000> : vector<128xf32>
    %20 = vector.multi_reduction <maximumf>, %11, %cst_10 [0] : vector<8x128xf32> to vector<128xf32>
    %21 = vector.shape_cast %20 : vector<128xf32> to vector<1x128xf32>
    %22 = vector.broadcast %21 : vector<1x128xf32> to vector<8x128xf32>
    %23 = arith.cmpf oeq, %11, %22 : vector<8x128xf32>
    %c8_i32 = arith.constant 8 : i32
    %24 = vector.broadcast %c8_i32 : i32 to vector<8x128xi32>
    %25 = arith.select %23, %19, %24 : vector<8x128xi1>, vector<8x128xi32>
    %cst_11 = arith.constant dense<2147483647> : vector<128xi32>
    %26 = vector.multi_reduction <minsi>, %25, %cst_11 [0] : vector<8x128xi32> to vector<128xi32>
    %27 = vector.shape_cast %26 : vector<128xi32> to vector<1x128xi32>
    %28 = arith.mulf %21, %15 : vector<1x128xf32>
    %c0_12 = arith.constant 0 : index
    %c0_13 = arith.constant 0 : index
    %29 = vector.load %arg5[%c0_12, %c0_13] : memref<2x128xf32, #tpu.memory_space<vmem>>, vector<1x128xf32>
    tpu.vector_store %arg5[%c0_12, %c0_13], %28 {strides = array<i32>} : memref<2x128xf32, #tpu.memory_space<vmem>>, vector<1x128xf32>,
    %c0_14 = arith.constant 0 : index
    %c0_15 = arith.constant 0 : index
    %30 = vector.load %arg6[%c0_14, %c0_15] : memref<2x128xi32, #tpu.memory_space<vmem>>, vector<1x128xi32>
    tpu.vector_store %arg6[%c0_14, %c0_15], %27 {strides = array<i32>} : memref<2x128xi32, #tpu.memory_space<vmem>>, vector<1x128xi32>,
    %31 = vector.broadcast %27 : vector<1x128xi32> to vector<8x128xi32>
    %32 = arith.cmpi eq, %19, %31 : vector<8x128xi32>
    %cst_16 = arith.constant 0xFF800000 : f32
    %33 = vector.broadcast %cst_16 : f32 to vector<8x128xf32>
    %34 = arith.select %32, %33, %11 : vector<8x128xi1>, vector<8x128xf32>
    %cst_17 = arith.constant dense<0xFF800000> : vector<128xf32>
    %35 = vector.multi_reduction <maximumf>, %34, %cst_17 [0] : vector<8x128xf32> to vector<128xf32>
    %36 = vector.shape_cast %35 : vector<128xf32> to vector<1x128xf32>
    %37 = vector.broadcast %36 : vector<1x128xf32> to vector<8x128xf32>
    %38 = arith.cmpf oeq, %34, %37 : vector<8x128xf32>
    %c8_i32_18 = arith.constant 8 : i32
    %39 = vector.broadcast %c8_i32_18 : i32 to vector<8x128xi32>
    %40 = arith.select %38, %19, %39 : vector<8x128xi1>, vector<8x128xi32>
    %cst_19 = arith.constant dense<2147483647> : vector<128xi32>
    %41 = vector.multi_reduction <minsi>, %40, %cst_19 [0] : vector<8x128xi32> to vector<128xi32>
    %42 = vector.shape_cast %41 : vector<128xi32> to vector<1x128xi32>
    %43 = arith.mulf %36, %15 : vector<1x128xf32>
    %c1 = arith.constant 1 : index
    %c0_20 = arith.constant 0 : index
    %44 = vector.load %arg5[%c1, %c0_20] : memref<2x128xf32, #tpu.memory_space<vmem>>, vector<1x128xf32>
    tpu.vector_store %arg5[%c1, %c0_20], %43 {strides = array<i32>} : memref<2x128xf32, #tpu.memory_space<vmem>>, vector<1x128xf32>,
    %c1_21 = arith.constant 1 : index
    %c0_22 = arith.constant 0 : index
    %45 = vector.load %arg6[%c1_21, %c0_22] : memref<2x128xi32, #tpu.memory_space<vmem>>, vector<1x128xi32>
    tpu.vector_store %arg6[%c1_21, %c0_22], %42 {strides = array<i32>} : memref<2x128xi32, #tpu.memory_space<vmem>>, vector<1x128xi32>,
    return
  }
  func.func @transform_0(%arg0: i32) -> (i32, i32) {
    %c0_i32 = arith.constant 0 : i32
    %c0_i32_0 = arith.constant 0 : i32
    return %arg0, %c0_i32 : i32, i32
  }
  func.func @transform_1(%arg0: i32) -> (i32, i32) {
    %c0_i32 = arith.constant 0 : i32
    %c0_i32_0 = arith.constant 0 : i32
    %c0_i32_1 = arith.constant 0 : i32
    return %c0_i32, %c0_i32_0 : i32, i32
  }
  func.func @transform_2(%arg0: i32) -> (i32, i32) {
    %c0_i32 = arith.constant 0 : i32
    %c0_i32_0 = arith.constant 0 : i32
    %c0_i32_1 = arith.constant 0 : i32
    return %c0_i32, %c0_i32_0 : i32, i32
  }
  func.func @transform_3(%arg0: i32) -> (i32, i32) {
    %c0_i32 = arith.constant 0 : i32
    %c0_i32_0 = arith.constant 0 : i32
    return %c0_i32, %arg0 : i32, i32
  }
  func.func @transform_4(%arg0: i32) -> (i32, i32) {
    %c0_i32 = arith.constant 0 : i32
    %c0_i32_0 = arith.constant 0 : i32
    return %c0_i32, %arg0 : i32, i32
  }
  func.func @transform_5(%arg0: i32) -> (i32, i32) {
    %c0_i32 = arith.constant 0 : i32
    %c0_i32_0 = arith.constant 0 : i32
    return %c0_i32, %arg0 : i32, i32
  }
}

</mosaic_0001>

<llo_original>
// kernel: tpu_custom_call.1
$region0: #{tpu_custom_call.1}
  #allocation0 [shape = 'u32[]', space=smem, size = 0x4, offset = 0x4, fixed_abs, tag = 'smem constant byte address 0x4 - core index']
  #allocation1 [shape = 'u32[144,128]{1,0:T(1,128)}', space=vmem, size = 0x12000, scoped, tag = 'internal scratch']
  %s0 = inlined_call_operand.vmem [shape: f32[16,32], index: 0, kind: input, shape index: {}]
  %s1 = inlined_call_operand.vmem [shape: f32[32,8], index: 1, kind: input, shape index: {}]
  %s2 = inlined_call_operand.vmem [shape: f32[8,1], index: 2, kind: input, shape index: {}]
  %s3 = inlined_call_operand.hbm [shape: f32[8,16], index: 3, kind: output, shape index: {0}]
  %s4 = inlined_call_operand.hbm [shape: f32[2,16], index: 4, kind: output, shape index: {1}]
  %s5 = inlined_call_operand.hbm [shape: s32[2,16], index: 5, kind: output, shape index: {2}]
  %6 = xla_tuple %s3, %s4, %s5
  %s7 = sld [smem:[#allocation0]]
  $region38: #{tpu_custom_call.1} parent=0
    _
  %s9 = ssub.s32 1, %s7
  %s10 = scalar_select 0, %s9, %s7
  $region1: #{tpu_custom_call.1} parent=0
    #allocation2 [shape = 'u8[4096]{0}', space=vmem, size = 0x1000, scoped, tag = 'output window, operand 0, single buffered']
    #allocation3 [shape = 's32[1]{0}', space=sflag, size = 0x4, scoped, tag = 'scoped memory for tpu_custom_call.1']
    #allocation4 [shape = 'u8[1024]{0}', space=vmem, size = 0x400, scoped, tag = 'output window, operand 1, single buffered']
    #allocation5 [shape = 's32[1]{0}', space=sflag, size = 0x4, scoped, tag = 'scoped memory for tpu_custom_call.1']
    #allocation6 [shape = 'u8[1024]{0}', space=vmem, size = 0x400, scoped, tag = 'output window, operand 2, single buffered']
    %11 = vsyncpa [#allocation3], 0
    %12 = vsyncpa [#allocation5], 0
    // Predicated region
    $region2: #{tpu_custom_call.1} parent=1 // pred_check
      _
    $region3: #{tpu_custom_call.1} parent=1 // pred_check_branch
      %14 = sbr.rel (0) target = $region5
    $region4: #{tpu_custom_call.1} parent=1 // pred_region
      _
    $region5: #{tpu_custom_call.1} parent=1 // pred_fallthru
      _
    // Predicated region
    $region6: #{tpu_custom_call.1} parent=1 // pred_check
      _
    $region7: #{tpu_custom_call.1} parent=1 // pred_check_branch
      %16 = sbr.rel (0) target = $region9
    $region8: #{tpu_custom_call.1} parent=1 // pred_region
      _
    $region9: #{tpu_custom_call.1} parent=1 // pred_fallthru
      _
    // Predicated region
    $region10: #{tpu_custom_call.1} parent=1 // pred_check
      _
    $region11: #{tpu_custom_call.1} parent=1 // pred_check_branch
      %18 = sbr.rel (0) target = $region13
    $region12: #{tpu_custom_call.1} parent=1 // pred_region
      _
    $region13: #{tpu_custom_call.1} parent=1 // pred_fallthru
      _
    %v19 = vld [vmem:[%s0] sm:$0xff]
    %v20 = vld [vmem:[%s0 + $0x8] sm:$0xff]
    %v21 = vld [vmem:[%s0 + $0x10] sm:$0xff]
    %v22 = vld [vmem:[%s0 + $0x18] sm:$0xff]
    %v23 = vld [vmem:[%s0 + $0x20] sm:$0xff]
    %v24 = vld [vmem:[%s0 + $0x28] sm:$0xff]
    %v25 = vld [vmem:[%s0 + $0x30] sm:$0xff]
    %v26 = vld [vmem:[%s0 + $0x38] sm:$0xff]
    %v27 = vld [vmem:[%s0 + $0x40] sm:$0xff]
    %v28 = vld [vmem:[%s0 + $0x48] sm:$0xff]
    %v29 = vld [vmem:[%s0 + $0x50] sm:$0xff]
    %v30 = vld [vmem:[%s0 + $0x58] sm:$0xff]
    %v31 = vld [vmem:[%s0 + $0x60] sm:$0xff]
    %v32 = vld [vmem:[%s0 + $0x68] sm:$0xff]
    %v33 = vld [vmem:[%s0 + $0x70] sm:$0xff]
    %v34 = vld [vmem:[%s0 + $0x78] sm:$0xff]
    %v35 = vld [vmem:[%s1] sm:$0xff]
    %v36 = vld [vmem:[%s1 + $0x8] sm:$0xff]
    %v37 = vld [vmem:[%s1 + $0x10] sm:$0xff]
    %v38 = vld [vmem:[%s1 + $0x18] sm:$0xff]
    %v39 = vld [vmem:[%s2] sm:$0xff]
    %vm40 = vcmask 261120
    %v42 = vsel %vm40, %v19, 0
    %v45 = vsel %vm40, %v20, 0
    %v48 = vsel %vm40, %v21, 0
    %v51 = vsel %vm40, %v22, 0
    %v54 = vsel %vm40, %v23, 0
    %v57 = vsel %vm40, %v24, 0
    %v60 = vsel %vm40, %v25, 0
    %v63 = vsel %vm40, %v26, 0
    %v66 = vsel %vm40, %v27, 0
    %v69 = vsel %vm40, %v28, 0
    %v72 = vsel %vm40, %v29, 0
    %v75 = vsel %vm40, %v30, 0
    %v78 = vsel %vm40, %v31, 0
    %v81 = vsel %vm40, %v32, 0
    %v84 = vsel %vm40, %v33, 0
    %v87 = vsel %vm40, %v34, 0
    %89 = vmatprep.subr.mxu0 0.0
    %90 = vmatpush1.msra.mxu0 0.0
    %91 = vmatprep.subr.mxu0 0.0
    %92 = vmatpush1.msra.mxu0 0.0
    %93 = vmatprep.subr.mxu0 0.0
    %94 = vmatpush1.msra.mxu0 0.0
    %95 = vmatprep.subr.mxu0 0.0
    %96 = vmatpush1.msra.mxu0 0.0
    %97 = vmatprep.subr.mxu0 0.0
    %98 = vmatpush1.msra.mxu0 0.0
    %99 = vmatprep.subr.mxu0 0.0
    %100 = vmatpush1.msra.mxu0 0.0
    %101 = vmatprep.subr.mxu0 0.0
    %102 = vmatpush1.msra.mxu0 0.0
    %103 = vmatprep.subr.mxu0 0.0
    %104 = vmatpush1.msra.mxu0 0.0
    %105 = vmatprep.subr.mxu0 0.0
    %106 = vmatpush1.msra.mxu0 0.0
    %107 = vmatprep.subr.mxu0 0.0
    %108 = vmatpush1.msra.mxu0 0.0
    %109 = vmatprep.subr.mxu0 0.0
    %110 = vmatpush1.msra.mxu0 0.0
    %111 = vmatprep.subr.mxu0 0.0
    %112 = vmatpush1.msra.mxu0 0.0
    %113 = vmatprep.subr.mxu0 0.0
    %114 = vmatpush1.msra.mxu0 %v38
    %115 = vmatprep.subr.mxu0 0.0
    %116 = vmatpush1.msra.mxu0 %v37
    %117 = vmatprep.subr.mxu0 0.0
    %118 = vmatpush1.msra.mxu0 %v36
    %119 = vmatprep.subr.mxu0 0.0
    %120 = vmatpush1.msra.mxu0 %v35
    %121 = vmatprep.subr.mxu0 0.0
    %122 = vmatpush2.msra.mxu0 0.0
    %123 = vmatprep.subr.mxu0 0.0
    %124 = vmatpush2.msra.mxu0 0.0
    %125 = vmatprep.subr.mxu0 0.0
    %126 = vmatpush2.msra.mxu0 0.0
    %127 = vmatprep.subr.mxu0 0.0
    %128 = vmatpush2.msra.mxu0 0.0
    %129 = vmatprep.subr.mxu0 0.0
    %130 = vmatpush2.msra.mxu0 0.0
    %131 = vmatprep.subr.mxu0 0.0
    %132 = vmatpush2.msra.mxu0 0.0
    %133 = vmatprep.subr.mxu0 0.0
    %134 = vmatpush2.msra.mxu0 0.0
    %135 = vmatprep.subr.mxu0 0.0
    %136 = vmatpush2.msra.mxu0 0.0
    %137 = vmatprep.subr.mxu0 0.0
    %138 = vmatpush2.msra.mxu0 0.0
    %139 = vmatprep.subr.mxu0 0.0
    %140 = vmatpush2.msra.mxu0 0.0
    %141 = vmatprep.subr.mxu0 0.0
    %142 = vmatpush2.msra.mxu0 0.0
    %143 = vmatprep.subr.mxu0 0.0
    %144 = vmatpush2.msra.mxu0 0.0
    %145 = vmatprep.subr.mxu0 0.0
    %146 = vmatpush2.msra.mxu0 0.0
    %147 = vmatprep.subr.mxu0 0.0
    %148 = vmatpush2.msra.mxu0 0.0
    %149 = vmatprep.subr.mxu0 0.0
    %150 = vmatpush2.msra.mxu0 0.0
    %151 = vmatprep.subr.mxu0 0.0
    %152 = vmatpush2.msra.mxu0 0.0
    %153 = vmatprep.mubr.f32.mxu0 0.0
    %154 = vmatmul.mubr.f32.gmra.mxu0 %v42
    %v155 = vpop.f32.mrf.mxu0
    %v156 = vadd.f32 0.0, %v155
    %v157 = vpop.f32.mrf.mxu0
    %158 = vmatprep.mubr.f32.mxu0 0.0
    %159 = vmatmul.mubr.f32.gmra.mxu0 %v45
    %v160 = vpop.f32.mrf.mxu0
    %v161 = vadd.f32 0.0, %v160
    %v162 = vpop.f32.mrf.mxu0
    %163 = vmatprep.mubr.f32.mxu0 0.0
    %164 = vmatmul.mubr.f32.gmra.mxu0 %v48
    %v165 = vpop.f32.mrf.mxu0
    %v166 = vadd.f32 0.0, %v165
    %v167 = vpop.f32.mrf.mxu0
    %168 = vmatprep.mubr.f32.mxu0 0.0
    %169 = vmatmul.mubr.f32.gmra.mxu0 %v51
    %v170 = vpop.f32.mrf.mxu0
    %v171 = vadd.f32 0.0, %v170
    %v172 = vpop.f32.mrf.mxu0
    %173 = vmatprep.mubr.f32.mxu0 0.0
    %174 = vmatmul.mubr.f32.gmra.mxu0 %v54
    %v175 = vpop.f32.mrf.mxu0
    %v176 = vadd.f32 0.0, %v175
    %v177 = vpop.f32.mrf.mxu0
    %178 = vmatprep.mubr.f32.mxu0 0.0
    %179 = vmatmul.mubr.f32.gmra.mxu0 %v57
    %v180 = vpop.f32.mrf.mxu0
    %v181 = vadd.f32 0.0, %v180
    %v182 = vpop.f32.mrf.mxu0
    %183 = vmatprep.mubr.f32.mxu0 0.0
    %184 = vmatmul.mubr.f32.gmra.mxu0 %v60
    %v185 = vpop.f32.mrf.mxu0
    %v186 = vadd.f32 0.0, %v185
    %v187 = vpop.f32.mrf.mxu0
    %188 = vmatprep.mubr.f32.mxu0 0.0
    %189 = vmatmul.mubr.f32.gmra.mxu0 %v63
    %v190 = vpop.f32.mrf.mxu0
    %v191 = vadd.f32 0.0, %v190
    %v192 = vpop.f32.mrf.mxu0
    %193 = vmatprep.mubr.f32.mxu0 0.0
    %194 = vmatmul.mubr.f32.gmra.mxu0 %v66
    %v195 = vpop.f32.mrf.mxu0
    %v196 = vadd.f32 0.0, %v195
    %v197 = vpop.f32.mrf.mxu0
    %198 = vmatprep.mubr.f32.mxu0 0.0
    %199 = vmatmul.mubr.f32.gmra.mxu0 %v69
    %v200 = vpop.f32.mrf.mxu0
    %v201 = vadd.f32 0.0, %v200
    %v202 = vpop.f32.mrf.mxu0
    %203 = vmatprep.mubr.f32.mxu0 0.0
    %204 = vmatmul.mubr.f32.gmra.mxu0 %v72
    %v205 = vpop.f32.mrf.mxu0
    %v206 = vadd.f32 0.0, %v205
    %v207 = vpop.f32.mrf.mxu0
    %208 = vmatprep.mubr.f32.mxu0 0.0
    %209 = vmatmul.mubr.f32.gmra.mxu0 %v75
    %v210 = vpop.f32.mrf.mxu0
    %v211 = vadd.f32 0.0, %v210
    %v212 = vpop.f32.mrf.mxu0
    %213 = vmatprep.mubr.f32.mxu0 0.0
    %214 = vmatmul.mubr.f32.gmra.mxu0 %v78
    %v215 = vpop.f32.mrf.mxu0
    %v216 = vadd.f32 0.0, %v215
    %v217 = vpop.f32.mrf.mxu0
    %218 = vmatprep.mubr.f32.mxu0 0.0
    %219 = vmatmul.mubr.f32.gmra.mxu0 %v81
    %v220 = vpop.f32.mrf.mxu0
    %v221 = vadd.f32 0.0, %v220
    %v222 = vpop.f32.mrf.mxu0
    %223 = vmatprep.mubr.f32.mxu0 0.0
    %224 = vmatmul.mubr.f32.gmra.mxu0 %v84
    %v225 = vpop.f32.mrf.mxu0
    %v226 = vadd.f32 0.0, %v225
    %v227 = vpop.f32.mrf.mxu0
    %228 = vmatprep.mubr.f32.mxu0 0.0
    %229 = vmatmul.mubr.f32.gmra.mxu0 %v87
    %v230 = vpop.f32.mrf.mxu0
    %v231 = vadd.f32 0.0, %v230
    %v232 = vpop.f32.mrf.mxu0
    %233 = vdwg.mxu0
    %234 = vxpose.xlu0.b32.start [1/16] %v156, 128
    %235 = vxpose.xlu0.b32.cont [2/16] %v161, 128
    %236 = vxpose.xlu0.b32.cont [3/16] %v166, 128
    %237 = vxpose.xlu0.b32.cont [4/16] %v171, 128
    %238 = vxpose.xlu0.b32.cont [5/16] %v176, 128
    %239 = vxpose.xlu0.b32.cont [6/16] %v181, 128
    %240 = vxpose.xlu0.b32.cont [7/16] %v186, 128
    %241 = vxpose.xlu0.b32.cont [8/16] %v191, 128
    %242 = vxpose.xlu0.b32.cont [9/16] %v196, 128
    %243 = vxpose.xlu0.b32.cont [10/16] %v201, 128
    %244 = vxpose.xlu0.b32.cont [11/16] %v206, 128
    %245 = vxpose.xlu0.b32.cont [12/16] %v211, 128
    %246 = vxpose.xlu0.b32.cont [13/16] %v216, 128
    %247 = vxpose.xlu0.b32.cont [14/16] %v221, 128
    %248 = vxpose.xlu0.b32.cont [15/16] %v226, 128
    %249 = vxpose.xlu0.b32.end [16/16] %v231, 128
    %v250 = vpop.trf.xlu0
    %v251 = vpop.trf.xlu0
    %v252 = vpop.trf.xlu0
    %v253 = vpop.trf.xlu0
    %v254 = vpop.trf.xlu0
    %v255 = vpop.trf.xlu0
    %v256 = vpop.trf.xlu0
    %v257 = vpop.trf.xlu0
    %v258 = vpop.trf.xlu0
    %v259 = vpop.trf.xlu0
    %v260 = vpop.trf.xlu0
    %v261 = vpop.trf.xlu0
    %v262 = vpop.trf.xlu0
    %v263 = vpop.trf.xlu0
    %v264 = vpop.trf.xlu0
    %v265 = vpop.trf.xlu0
    %267 = vset.pattern.permute.xlu0 0
    %268 = vperm.xlu0 %267, %v39
    %v269 = vpop.permute.xlu0 %268
    %v271 = vadd.f32 %v250, %v269
    %v272 = vrot.slane %v271, 4
    %v273 = vmax.f32 %v271, %v272
    %v274 = vrot.slane %v273, 2
    %v275 = vmax.f32 %v273, %v274
    %v276 = vrot.slane %v275, 1
    %v277 = vmax.f32 %v275, %v276
    %v278 = vsub.f32 %v271, %v277
    %v279 = vmul.f32 %v278, 1.442695
    %v280 = vpow.pop %v279
    %v281 = vrot.slane %v280, 4
    %v282 = vadd.f32 %v280, %v281
    %v283 = vrot.slane %v282, 2
    %v284 = vadd.f32 %v282, %v283
    %v285 = vrot.slane %v284, 1
    %v286 = vadd.f32 %v284, %v285
    %v287 = vrcp.pop %v286
    %v288 = vmul.f32 1.0, %v287
    %v289 = vmul.f32 %v280, %v288
    %290 = vst [vmem:[#allocation2] sm:$0xff] %v289
    %v291 = vlaneseq
    %v292 = vshrl.u32 %v291, 7
    %v293 = vrot.slane %v280, 4
    %v294 = vmax.f32 %v280, %v293
    %v295 = vrot.slane %v294, 2
    %v296 = vmax.f32 %v294, %v295
    %v297 = vrot.slane %v296, 1
    %v298 = vmax.f32 %v296, %v297
    %vm299 = vcmp.eq.f32.partialorder %v280, %v298
    %v300 = vsel %vm299, %v292, 8
    %v301 = vrot.slane %v300, 4
    %vm302 = vcmp.lt.s32.totalorder %v300, %v301
    %v303 = vsel %vm302, %v300, %v301
    %v304 = vrot.slane %v303, 2
    %vm305 = vcmp.lt.s32.totalorder %v303, %v304
    %v306 = vsel %vm305, %v303, %v304
    %v307 = vrot.slane %v306, 1
    %vm308 = vcmp.lt.s32.totalorder %v306, %v307
    %v309 = vsel %vm308, %v306, %v307
    %v310 = vmul.f32 %v298, %v288
    %311 = vst [vmem:[#allocation4] sm:$0x1] %v310
    %312 = vst [vmem:[#allocation6] sm:$0x1] %v309
    %vm313 = vcmp.eq.s32.totalorder %v292, %v309
    %v314 = vsel %vm313, -inf, %v280
    %v315 = vrot.slane %v314, 4
    %v316 = vmax.f32 %v314, %v315
    %v317 = vrot.slane %v316, 2
    %v318 = vmax.f32 %v316, %v317
    %v319 = vrot.slane %v318, 1
    %v320 = vmax.f32 %v318, %v319
    %vm321 = vcmp.eq.f32.partialorder %v314, %v320
    %v322 = vsel %vm321, %v292, 8
    %v323 = vrot.slane %v322, 4
    %vm324 = vcmp.lt.s32.totalorder %v322, %v323
    %v325 = vsel %vm324, %v322, %v323
    %v326 = vrot.slane %v325, 2
    %vm327 = vcmp.lt.s32.totalorder %v325, %v326
    %v328 = vsel %vm327, %v325, %v326
    %v329 = vrot.slane %v328, 1
    %vm330 = vcmp.lt.s32.totalorder %v328, %v329
    %v331 = vsel %vm330, %v328, %v329
    %v332 = vmul.f32 %v320, %v288
    %333 = vst [vmem:[#allocation4 + $0x1] sm:$0x1] %v332
    %334 = vst [vmem:[#allocation6 + $0x1] sm:$0x1] %v331
    // Predicated region
    $region14: #{tpu_custom_call.1} parent=1 // pred_check
      _
    $region15: #{tpu_custom_call.1} parent=1 // pred_check_branch
      %336 = sbr.rel (0) target = $region17
    $region16: #{tpu_custom_call.1} parent=1 // pred_region
      %s338 = ssub.s32 128, 128
      %339 = vsyncadd [#allocation3], %s338
      %s341 = sshll.u32 [#allocation2], 4
      %s342 = int_to_ptr.vmem [resolvable:$true] %s341
      %344 = dma.vmem_to_hbm [thread:$0]  %s342, 128, %s3, [#allocation3]
    $region17: #{tpu_custom_call.1} parent=1 // pred_fallthru
      _
    // Predicated region
    $region18: #{tpu_custom_call.1} parent=1 // pred_check
      _
    $region19: #{tpu_custom_call.1} parent=1 // pred_check_branch
      %346 = sbr.rel (0) target = $region21
    $region20: #{tpu_custom_call.1} parent=1 // pred_region
      %s348 = ssub.s32 32, 32
      %349 = vsyncadd [#allocation5], %s348
      %s351 = sshll.u32 [#allocation4], 4
      %s352 = int_to_ptr.vmem [resolvable:$true] %s351
      %354 = dma.vmem_to_hbm [thread:$0]  %s352, 32, %s4, [#allocation5]
    $region21: #{tpu_custom_call.1} parent=1 // pred_fallthru
      _
    // Predicated region
    $region22: #{tpu_custom_call.1} parent=1 // pred_check
      _
    $region23: #{tpu_custom_call.1} parent=1 // pred_check_branch
      %356 = sbr.rel (0) target = $region25
    $region24: #{tpu_custom_call.1} parent=1 // pred_region
      %s358 = ssub.s32 32, 32
      %359 = vsyncadd [#allocation5], %s358
      %s361 = sshll.u32 [#allocation6], 4
      %s362 = int_to_ptr.vmem [resolvable:$true] %s361
      %364 = dma.vmem_to_hbm [thread:$0]  %s362, 32, %s5, [#allocation5]
    $region25: #{tpu_custom_call.1} parent=1 // pred_fallthru
      _
    // Predicated region
    $region26: #{tpu_custom_call.1} parent=1 // pred_check
      _
    $region27: #{tpu_custom_call.1} parent=1 // pred_check_branch
      %366 = sbr.rel (0) target = $region29
    $region28: #{tpu_custom_call.1} parent=1 // pred_region
      %367 = dma.done [#allocation3], 128
    $region29: #{tpu_custom_call.1} parent=1 // pred_fallthru
      _
    // Predicated region
    $region30: #{tpu_custom_call.1} parent=1 // pred_check
      _
    $region31: #{tpu_custom_call.1} parent=1 // pred_check_branch
      %369 = sbr.rel (0) target = $region33
    $region32: #{tpu_custom_call.1} parent=1 // pred_region
      %370 = dma.done [#allocation5], 32
    $region33: #{tpu_custom_call.1} parent=1 // pred_fallthru
      _
    // Predicated region
    $region34: #{tpu_custom_call.1} parent=1 // pred_check
      _
    $region35: #{tpu_custom_call.1} parent=1 // pred_check_branch
      %372 = sbr.rel (0) target = $region37
    $region36: #{tpu_custom_call.1} parent=1 // pred_region
      %373 = dma.done [#allocation5], 32
    $region37: #{tpu_custom_call.1} parent=1 // pred_fallthru
      _
    %374 = vsyncpa [#allocation3], 1
    %375 = vsyncpa [#allocation5], 1

</llo_original>
